<compile_context>
chip_gen: v7x
topology: tpu7x:2x2x1
jax: 0.10.0
libtpu: 0.0.40
codegen_flags: <defaults>
</compile_context>

<pallas_src>
import functools

import jax
import jax.numpy as jnp
from jax.experimental import pallas as pl
from jax.experimental.pallas import tpu as pltpu


def _round_up(x, m):
    return (x + m - 1) // m * m


def _bengio_kernel(cur_ref, nxt_ref, w_ref, b_ref, out_ref, *, in_len, tile_t):
    """One (batch, seq-tile) grid step.

    cur_ref: (TILE_T, E)      bf16   rows [t0, t0+TILE_T) of the embeddings
    nxt_ref: (HALO,   E)      bf16   rows [t0+TILE_T, t0+TILE_T+HALO)  (halo)
    w_ref:   (L, E, H_pad)    bf16   per-position projection weights
    b_ref:   (1, H_pad)       f32    sum of the L biases
    out_ref: (TILE_T, H_pad)  f32
    """
    # Haloed block of embeddings for this tile (concat offset is 16-aligned).
    x = jnp.concatenate([cur_ref[...], nxt_ref[...]], axis=0)  # (TILE_T+HALO, E)

    acc = None
    for i in range(in_len):  # L is tiny: fully unrolled MXU matmuls
        p = jnp.dot(x, w_ref[i], preferred_element_type=jnp.float32)
        # output row j needs input row j + i  ->  shift the f32 result by i rows
        p_i = p[i:i + tile_t, :]
        acc = p_i if acc is None else acc + p_i

    out_ref[...] = jnp.tanh(acc + b_ref[...]).astype(out_ref.dtype)


@functools.partial(jax.jit, static_argnames=("in_len",))
def bengio_forward(input_ids, hidden, emb_table, weights, biases, *, in_len):
    """input_ids: (B, S) int32; returns (output (B, T, H) f32, hidden)."""
    B, S = input_ids.shape
    E = emb_table.shape[1]
    H = weights.shape[-1]
    L = in_len
    T = S - L + 1  # output sequence length

    # ---- static tiling decisions --------------------------------------------
    H_pad = _round_up(H, 128)                       # lane-dense output stores
    HALO = _round_up(max(L - 1, 1), 16)             # halo rows from next block
    TILE_T = 256 if T >= 256 else _round_up(T, 16)  # 256 = MXU friendly
    TILE_T = _round_up(TILE_T, HALO)                # halo block index exactness
    T_pad = _round_up(T, TILE_T)
    S_pad = T_pad + HALO                            # >= T + L - 1 = S
    n_t = T_pad // TILE_T

    # ---- glue: embedding gather (bf16) + zero padding -----------------------
    emb = emb_table.astype(jnp.bfloat16)[input_ids]            # (B, S, E) bf16
    emb = jnp.pad(emb, ((0, 0), (0, S_pad - S), (0, 0)))       # (B, S_pad, E)

    w = jnp.pad(weights, ((0, 0), (0, 0), (0, H_pad - H)))     # (L, E, H_pad)
    w = w.astype(jnp.bfloat16)
    b_sum = jnp.pad(jnp.sum(biases, axis=0, keepdims=True),
                    ((0, 0), (0, H_pad - H)))                  # (1, H_pad) f32

    kernel = functools.partial(_bengio_kernel, in_len=L, tile_t=TILE_T)

    halo_stride = TILE_T // HALO  # block index step for the halo spec

    out = pl.pallas_call(
        kernel,
        out_shape=jax.ShapeDtypeStruct((B, T_pad, H_pad), jnp.float32),
        grid_spec=pltpu.PrefetchScalarGridSpec(
            num_scalar_prefetch=0,
            grid=(B, n_t),
            in_specs=[
                # current seq tile of embeddings
                pl.BlockSpec((None, TILE_T, E), lambda b, t: (b, t, 0)),
                # HALO rows immediately after the current tile (same array)
                pl.BlockSpec((None, HALO, E),
                             lambda b, t: (b, (t + 1) * halo_stride, 0)),
                # all L projection weights (constant block -> fetched once)
                pl.BlockSpec((L, E, H_pad), lambda b, t: (0, 0, 0)),
                # summed bias
                pl.BlockSpec((1, H_pad), lambda b, t: (0, 0)),
            ],
            out_specs=pl.BlockSpec((None, TILE_T, H_pad), lambda b, t: (b, t, 0)),
        ),
        compiler_params=pltpu.CompilerParams(
            dimension_semantics=("parallel", "parallel"),
        ),
    )(emb, emb, w, b_sum)

    return out[:, :T, :H], hidden


def init_params(key, ntoken, emb_size, in_len, nb_hidden):
    """Deterministic init mirroring the module's init_weights()."""
    k_emb, k_w, k_b = jax.random.split(key, 3)
    initrange = 0.1
    emb_table = jax.random.uniform(
        k_emb, (ntoken, emb_size), jnp.float32, -initrange, initrange
    )
    # PyTorch Linear weight is (out, in); we store transposed (in_len, E, H).
    weights = jax.random.uniform(
        k_w, (in_len, emb_size, nb_hidden), jnp.float32, -initrange, initrange
    )
    bias_bound = 1.0 / (emb_size ** 0.5)  # PyTorch default bias init range
    biases = jax.random.uniform(
        k_b, (in_len, nb_hidden), jnp.float32, -bias_bound, bias_bound
    )
    return emb_table, weights, biases


if __name__ == "__main__":
    ntoken, emb_size, in_len, nb_hidden = 50, 32, 3, 32
    batch, seq = 2, 8

    key = jax.random.PRNGKey(0)
    k_params, k_input = jax.random.split(key)
    emb_table, weights, biases = init_params(
        k_params, ntoken, emb_size, in_len, nb_hidden
    )

    input_ids = jax.random.randint(k_input, (batch, seq), 0, ntoken, jnp.int32)
    hidden = jnp.zeros((1, batch, nb_hidden), jnp.float32)  # init_hidden(bsz)

    output, hidden_out = bengio_forward(
        input_ids, hidden, emb_table, weights, biases, in_len=in_len
    )
    jax.block_until_ready(output)

    # full-precision reference in plain JAX (kernel uses bf16 matmul inputs,
    # f32 accumulation -> loose-ish tolerance)
    emb = emb_table[input_ids]
    T = seq - in_len + 1
    ref = jnp.tanh(
        sum(
            emb[:, i : i + T, :] @ weights[i] + biases[i]
            for i in range(in_len)
        )
    )
    assert output.shape == (batch, T, nb_hidden)
    assert hidden_out.shape == hidden.shape
    assert jnp.allclose(output, ref, atol=2e-2), "mismatch vs reference"

    print("KERNEL_OK")
</pallas_src>

<mosaic_0001>
module attributes {stable_mosaic.version = 11 : i64} {
  func.func @_bengio_kernel(%arg0: i32, %arg1: i32, %arg2: memref<1x16x32xbf16, #tpu.memory_space<vmem>>, %arg3: memref<1x16x32xbf16, #tpu.memory_space<vmem>>, %arg4: memref<3x32x128xbf16, #tpu.memory_space<vmem>>, %arg5: memref<1x128xf32, #tpu.memory_space<vmem>>, %arg6: memref<1x16x128xf32, #tpu.memory_space<vmem>>) attributes {dimension_semantics = [#tpu.dimension_semantics<parallel>, #tpu.dimension_semantics<parallel>], iteration_bounds = array<i64: 2, 1>, scalar_prefetch = 0 : i64, scratch_operands = 0 : i64, tpu.core_type = #tpu.core_type<tc>, window_params = [{transform_indices = @transform_0, window_bounds = array<i64: 1, 16, 32>}, {transform_indices = @transform_1, window_bounds = array<i64: 1, 16, 32>}, {pipeline_mode = #tpu.pipeline_mode<synchronous>, transform_indices = @transform_2, window_bounds = array<i64: 3, 32, 128>}, {pipeline_mode = #tpu.pipeline_mode<synchronous>, transform_indices = @transform_3, window_bounds = array<i64: 1, 128>}, {transform_indices = @transform_4, window_bounds = array<i64: 1, 16, 128>}]} {
    %c0 = arith.constant 0 : index
    %c0_0 = arith.constant 0 : index
    %c0_1 = arith.constant 0 : index
    %0 = vector.load %arg2[%c0, %c0_0, %c0_1] : memref<1x16x32xbf16, #tpu.memory_space<vmem>>, vector<1x16x32xbf16>
    %1 = vector.shape_cast %0 : vector<1x16x32xbf16> to vector<16x32xbf16>
    %c0_2 = arith.constant 0 : index
    %c0_3 = arith.constant 0 : index
    %c0_4 = arith.constant 0 : index
    %2 = vector.load %arg3[%c0_2, %c0_3, %c0_4] : memref<1x16x32xbf16, #tpu.memory_space<vmem>>, vector<1x16x32xbf16>
    %3 = vector.shape_cast %2 : vector<1x16x32xbf16> to vector<16x32xbf16>
    %4 = tpu.concatenate %1, %3 in 0 : vector<16x32xbf16>, vector<16x32xbf16> -> vector<32x32xbf16>
    %c0_5 = arith.constant 0 : index
    %c0_6 = arith.constant 0 : index
    %c0_7 = arith.constant 0 : index
    %5 = vector.load %arg4[%c0_5, %c0_6, %c0_7] : memref<3x32x128xbf16, #tpu.memory_space<vmem>>, vector<1x32x128xbf16>
    %6 = vector.shape_cast %5 : vector<1x32x128xbf16> to vector<32x128xbf16>
    %cst = arith.constant dense<0.000000e+00> : vector<32x128xf32>
    %7 = tpu.matmul %4, %6, %cst {dimension_numbers = #tpu.dot_dimension_numbers<[1], [0], [0], [1], [0, 0, 1, 1], [], []>} : vector<32x32xbf16>, vector<32x128xbf16>, vector<32x128xf32> -> vector<32x128xf32>
    %8 = vector.extract_strided_slice %7 {offsets = [0, 0], sizes = [16, 128], strides = [1, 1]} : vector<32x128xf32> to vector<16x128xf32>
    %c1 = arith.constant 1 : index
    %c0_8 = arith.constant 0 : index
    %c0_9 = arith.constant 0 : index
    %9 = vector.load %arg4[%c1, %c0_8, %c0_9] : memref<3x32x128xbf16, #tpu.memory_space<vmem>>, vector<1x32x128xbf16>
    %10 = vector.shape_cast %9 : vector<1x32x128xbf16> to vector<32x128xbf16>
    %cst_10 = arith.constant dense<0.000000e+00> : vector<32x128xf32>
    %11 = tpu.matmul %4, %10, %cst_10 {dimension_numbers = #tpu.dot_dimension_numbers<[1], [0], [0], [1], [0, 0, 1, 1], [], []>} : vector<32x32xbf16>, vector<32x128xbf16>, vector<32x128xf32> -> vector<32x128xf32>
    %12 = vector.extract_strided_slice %11 {offsets = [1, 0], sizes = [16, 128], strides = [1, 1]} : vector<32x128xf32> to vector<16x128xf32>
    %13 = arith.addf %8, %12 : vector<16x128xf32>
    %c2 = arith.constant 2 : index
    %c0_11 = arith.constant 0 : index
    %c0_12 = arith.constant 0 : index
    %14 = vector.load %arg4[%c2, %c0_11, %c0_12] : memref<3x32x128xbf16, #tpu.memory_space<vmem>>, vector<1x32x128xbf16>
    %15 = vector.shape_cast %14 : vector<1x32x128xbf16> to vector<32x128xbf16>
    %cst_13 = arith.constant dense<0.000000e+00> : vector<32x128xf32>
    %16 = tpu.matmul %4, %15, %cst_13 {dimension_numbers = #tpu.dot_dimension_numbers<[1], [0], [0], [1], [0, 0, 1, 1], [], []>} : vector<32x32xbf16>, vector<32x128xbf16>, vector<32x128xf32> -> vector<32x128xf32>
    %17 = vector.extract_strided_slice %16 {offsets = [2, 0], sizes = [16, 128], strides = [1, 1]} : vector<32x128xf32> to vector<16x128xf32>
    %18 = arith.addf %13, %17 : vector<16x128xf32>
    %c0_14 = arith.constant 0 : index
    %c0_15 = arith.constant 0 : index
    %19 = vector.load %arg5[%c0_14, %c0_15] : memref<1x128xf32, #tpu.memory_space<vmem>>, vector<1x128xf32>
    %20 = vector.broadcast %19 : vector<1x128xf32> to vector<16x128xf32>
    %21 = arith.addf %18, %20 : vector<16x128xf32>
    %22 = math.tanh %21 : vector<16x128xf32>
    %c0_16 = arith.constant 0 : index
    %c0_17 = arith.constant 0 : index
    %c0_18 = arith.constant 0 : index
    %23 = vector.load %arg6[%c0_16, %c0_17, %c0_18] : memref<1x16x128xf32, #tpu.memory_space<vmem>>, vector<1x16x128xf32>
    %24 = vector.shape_cast %23 : vector<1x16x128xf32> to vector<16x128xf32>
    %25 = vector.shape_cast %22 : vector<16x128xf32> to vector<1x16x128xf32>
    tpu.vector_store %arg6[%c0_16, %c0_17, %c0_18], %25 {strides = array<i32>} : memref<1x16x128xf32, #tpu.memory_space<vmem>>, vector<1x16x128xf32>,
    return
  }
  func.func @transform_0(%arg0: i32, %arg1: i32) -> (i32, i32, i32) {
    %c0_i32 = arith.constant 0 : i32
    %c0_i32_0 = arith.constant 0 : i32
    return %arg0, %arg1, %c0_i32 : i32, i32, i32
  }
  func.func @transform_1(%arg0: i32, %arg1: i32) -> (i32, i32, i32) {
    %c1_i32 = arith.constant 1 : i32
    %0 = arith.addi %arg1, %c1_i32 : i32
    %c1_i32_0 = arith.constant 1 : i32
    %1 = arith.muli %0, %c1_i32_0 : i32
    %c0_i32 = arith.constant 0 : i32
    %c0_i32_1 = arith.constant 0 : i32
    return %arg0, %1, %c0_i32 : i32, i32, i32
  }
  func.func @transform_2(%arg0: i32, %arg1: i32) -> (i32, i32, i32) {
    %c0_i32 = arith.constant 0 : i32
    %c0_i32_0 = arith.constant 0 : i32
    %c0_i32_1 = arith.constant 0 : i32
    %c0_i32_2 = arith.constant 0 : i32
    return %c0_i32, %c0_i32_0, %c0_i32_1 : i32, i32, i32
  }
  func.func @transform_3(%arg0: i32, %arg1: i32) -> (i32, i32) {
    %c0_i32 = arith.constant 0 : i32
    %c0_i32_0 = arith.constant 0 : i32
    %c0_i32_1 = arith.constant 0 : i32
    return %c0_i32, %c0_i32_0 : i32, i32
  }
  func.func @transform_4(%arg0: i32, %arg1: i32) -> (i32, i32, i32) {
    %c0_i32 = arith.constant 0 : i32
    %c0_i32_0 = arith.constant 0 : i32
    return %arg0, %arg1, %c0_i32 : i32, i32, i32
  }
}

</mosaic_0001>

<llo_original>
// kernel: bengio_forward.1
$region0: #{bengio_forward.1}
  #allocation0 [shape = 'u32[]', space=smem, size = 0x4, offset = 0x4, fixed_abs, tag = 'smem constant byte address 0x4 - core index']
  #allocation1 [shape = 'u32[144,128]{1,0:T(1,128)}', space=vmem, size = 0x12000, scoped, tag = 'internal scratch']
  %s0 = inlined_call_operand.vmem [shape: bf16[2,32,32], index: 0, kind: input, shape index: {}, may-alias: {0,1}]
  %s1 = inlined_call_operand.vmem [shape: bf16[2,32,32], index: 1, kind: input, shape index: {}, may-alias: {0,1}]
  %s2 = inlined_call_operand.vmem [shape: bf16[3,32,128], index: 2, kind: input, shape index: {}]
  %s3 = inlined_call_operand.vmem [shape: f32[1,128], index: 3, kind: input, shape index: {}]
  %s4 = inlined_call_operand.vmem [shape: f32[2,16,128], index: 4, kind: output, shape index: {}]
  %s5 = sld [smem:[#allocation0]]
  $region49: #{bengio_forward.1} parent=0
    _
  %s7 = ssub.s32 1, %s5
  %s8 = scalar_select 0, %s7, %s5
  loop: start=0, step=1, limit=4
  $region2: #{bengio_forward.1} parent=0 // loop_pre_header
    _
  $region3: #{bengio_forward.1} parent=0 // loop_header
    %s10 = sphi 0, %s14
    %p11 = scmp.ge.s32.totalorder %s10, 4
    %s17 = sphi 0, %s29
    %s18 = sphi 0, %s25
    %s19 = sphi 0, %s17
    %s20 = sphi 0, %s18
    %s21 = sphi 0, %s19
    %s22 = sphi 0, %s20
    %s34 = sphi 0, %s36
    %s37 = sphi 0, %s34
    %s38 = sphi 0, %s37
    %s54 = sphi 0, %s38
    %s64 = sphi 0, %s66
    %s67 = sphi 0, %s64
    %s68 = sphi 0, %s67
    %s84 = sphi 0, %s68
    %s88 = sphi 0, %s88
    %s90 = sphi 0, %s88
    %s91 = sphi 0, %s90
    %s105 = sphi 0, %s91
    %s109 = sphi 0, %s109
    %s111 = sphi 0, %s109
    %s112 = sphi 0, %s111
    %s126 = sphi 0, %s112
    %s134 = sphi 0, %s136
    %s137 = sphi 0, %s134
    %s138 = sphi 0, %s137
    %s154 = sphi 0, %s138
  $region4: #{bengio_forward.1} parent=0 // loop_header_branch
    %13 = sbr.rel (%p11) target = $region8
  $region5: #{bengio_forward.1} parent=0 // loop_body
    %s15 = ssub.s32 %s10, 1
    %s16 = ssub.s32 %s10, 2
    %s23 = sadd.s32 1, %s18
    %p24 = scmp.ge.s32.totalorder %s23, 1
    %s25 = scalar_select %p24, 0, %s23
    %s26 = sadd.s32 1, %s17
    %s27 = scalar_select %p24, %s26, %s17
    %p28 = scmp.ge.s32.totalorder %s27, 2
    %s29 = scalar_select %p28, 0, %s27
    %s30 = ssub.s32 %s17, %s29
    %s31 = ssub.s32 %s18, %s25
    %s32 = sor.u32 %s30, %s31
    %p33 = scmp.eq.s32.totalorder %s32, 0
    %s35 = sadd.s32 %s34, 1
    %s36 = scalar_select %p33, %s34, %s35
    %p39 = pneg %p33
    %p40 = scmp.eq.s32.totalorder %s10, 1
    %p41 = por %p39, %p40
    %p42 = scmp.ne.s32.totalorder %s34, %s37
    %p43 = scmp.eq.s32.totalorder %s10, 0
    %p44 = por %p42, %p43
    %p45 = scmp.ne.s32.totalorder %s34, %s37
    %p46 = scmp.eq.s32.totalorder %s15, 1
    %p47 = por %p45, %p46
    %p48 = scmp.ne.s32.totalorder %s37, %s38
    %p49 = scmp.eq.s32.totalorder %s15, 0
    %p50 = por %p48, %p49
    %p51 = scmp.ne.s32.totalorder %s37, %s38
    %p52 = scmp.eq.s32.totalorder %s16, 1
    %p53 = por %p51, %p52
    %p55 = scmp.ne.s32.totalorder %s38, %s54
    %p56 = scmp.eq.s32.totalorder %s16, 0
    %p57 = por %p55, %p56
    %s58 = sadd.s32 %s18, 1
    %s59 = sadd.s32 %s25, 1
    %s60 = ssub.s32 %s17, %s29
    %s61 = ssub.s32 %s58, %s59
    %s62 = sor.u32 %s60, %s61
    %p63 = scmp.eq.s32.totalorder %s62, 0
    %s65 = sadd.s32 %s64, 1
    %s66 = scalar_select %p63, %s64, %s65
    %p69 = pneg %p63
    %p70 = scmp.eq.s32.totalorder %s10, 1
    %p71 = por %p69, %p70
    %p72 = scmp.ne.s32.totalorder %s64, %s67
    %p73 = scmp.eq.s32.totalorder %s10, 0
    %p74 = por %p72, %p73
    %p75 = scmp.ne.s32.totalorder %s64, %s67
    %p76 = scmp.eq.s32.totalorder %s15, 1
    %p77 = por %p75, %p76
    %p78 = scmp.ne.s32.totalorder %s67, %s68
    %p79 = scmp.eq.s32.totalorder %s15, 0
    %p80 = por %p78, %p79
    %p81 = scmp.ne.s32.totalorder %s67, %s68
    %p82 = scmp.eq.s32.totalorder %s16, 1
    %p83 = por %p81, %p82
    %p85 = scmp.ne.s32.totalorder %s68, %s84
    %p86 = scmp.eq.s32.totalorder %s16, 0
    %p87 = por %p85, %p86
    %s89 = sadd.s32 %s88, 1
    %p92 = scmp.eq.s32.totalorder %s10, 1
    %p93 = scmp.ne.s32.totalorder %s88, %s90
    %p94 = scmp.eq.s32.totalorder %s10, 0
    %p95 = por %p93, %p94
    %p96 = scmp.ne.s32.totalorder %s88, %s90
    %p97 = scmp.eq.s32.totalorder %s15, 1
    %p98 = por %p96, %p97
    %p99 = scmp.ne.s32.totalorder %s90, %s91
    %p100 = scmp.eq.s32.totalorder %s15, 0
    %p101 = por %p99, %p100
    %p102 = scmp.ne.s32.totalorder %s90, %s91
    %p103 = scmp.eq.s32.totalorder %s16, 1
    %p104 = por %p102, %p103
    %p106 = scmp.ne.s32.totalorder %s91, %s105
    %p107 = scmp.eq.s32.totalorder %s16, 0
    %p108 = por %p106, %p107
    %s110 = sadd.s32 %s109, 1
    %p113 = scmp.eq.s32.totalorder %s10, 1
    %p114 = scmp.ne.s32.totalorder %s109, %s111
    %p115 = scmp.eq.s32.totalorder %s10, 0
    %p116 = por %p114, %p115
    %p117 = scmp.ne.s32.totalorder %s109, %s111
    %p118 = scmp.eq.s32.totalorder %s15, 1
    %p119 = por %p117, %p118
    %p120 = scmp.ne.s32.totalorder %s111, %s112
    %p121 = scmp.eq.s32.totalorder %s15, 0
    %p122 = por %p120, %p121
    %p123 = scmp.ne.s32.totalorder %s111, %s112
    %p124 = scmp.eq.s32.totalorder %s16, 1
    %p125 = por %p123, %p124
    %p127 = scmp.ne.s32.totalorder %s112, %s126
    %p128 = scmp.eq.s32.totalorder %s16, 0
    %p129 = por %p127, %p128
    %s130 = ssub.s32 %s17, %s29
    %s131 = ssub.s32 %s18, %s25
    %s132 = sor.u32 %s130, %s131
    %p133 = scmp.eq.s32.totalorder %s132, 0
    %s135 = sadd.s32 %s134, 1
    %s136 = scalar_select %p133, %s134, %s135
    %p139 = pneg %p133
    %p140 = scmp.eq.s32.totalorder %s10, 1
    %p141 = por %p139, %p140
    %p142 = scmp.ne.s32.totalorder %s134, %s137
    %p143 = scmp.eq.s32.totalorder %s10, 0
    %p144 = por %p142, %p143
    %p145 = scmp.ne.s32.totalorder %s134, %s137
    %p146 = scmp.eq.s32.totalorder %s15, 1
    %p147 = por %p145, %p146
    %p148 = scmp.ne.s32.totalorder %s137, %s138
    %p149 = scmp.eq.s32.totalorder %s15, 0
    %p150 = por %p148, %p149
    %p151 = scmp.ne.s32.totalorder %s137, %s138
    %p152 = scmp.eq.s32.totalorder %s16, 1
    %p153 = por %p151, %p152
    %p155 = scmp.ne.s32.totalorder %s138, %s154
    %p156 = scmp.eq.s32.totalorder %s16, 0
    %p157 = por %p155, %p156
    %p158 = scmp.le.s32.totalorder 1, %s10
    %p159 = scmp.lt.s32.totalorder %s10, 3
    %p160 = pnand %p158, %p159
    %p161 = pneg %p160
    // Predicated region
    $region9: #{bengio_forward.1} parent=5 // pred_check
      _
    $region10: #{bengio_forward.1} parent=5 // pred_check_branch
      %163 = sbr.rel (%p160) target = $region12
    $region11: #{bengio_forward.1} parent=5 // pred_region
      %s164 = ssub.s32 %s10, 1
      // Predicated region
      $region13: #{bengio_forward.1} parent=11 // pred_check
        %p165 = pneg %p101
      $region14: #{bengio_forward.1} parent=11 // pred_check_branch
        %167 = sbr.rel (%p165) target = $region16
      $region15: #{bengio_forward.1} parent=11 // pred_region
        _
      $region16: #{bengio_forward.1} parent=11 // pred_fallthru
        _
      // Predicated region
      $region17: #{bengio_forward.1} parent=11 // pred_check
        %p168 = pneg %p122
      $region18: #{bengio_forward.1} parent=11 // pred_check_branch
        %170 = sbr.rel (%p168) target = $region20
      $region19: #{bengio_forward.1} parent=11 // pred_region
        _
      $region20: #{bengio_forward.1} parent=11 // pred_fallthru
        _
    $region12: #{bengio_forward.1} parent=5 // pred_fallthru
      _
    %p171 = scmp.lt.s32.totalorder %s10, 2
    // Predicated region
    $region21: #{bengio_forward.1} parent=5 // pred_check
      %p172 = pneg %p171
    $region22: #{bengio_forward.1} parent=5 // pred_check_branch
      %174 = sbr.rel (%p172) target = $region24
    $region23: #{bengio_forward.1} parent=5 // pred_region
      // Predicated region
      $region25: #{bengio_forward.1} parent=23 // pred_check
        %p175 = pneg %p44
      $region26: #{bengio_forward.1} parent=23 // pred_check_branch
        %177 = sbr.rel (%p175) target = $region28
      $region27: #{bengio_forward.1} parent=23 // pred_region
        %s178 = smul.u32 2, %s18
        %p179 = scmp.lt.s32.totalorder %s17, 1
        %s180 = scalar_select %p179, %s17, 1
        %p181 = scmp.lt.s32.totalorder %s178, 3
        %s182 = scalar_select %p181, %s178, 3
        %s183 = smul.addr %s180, 4
        %s184 = sadd.s32 %s182, %s183
        %s185 = smul.addr %s184, 4
        %s186 = scalar_lea.vmem %s0, %s185
        %s187 = smul.u32 2, %s18
      $region28: #{bengio_forward.1} parent=23 // pred_fallthru
        _
      // Predicated region
      $region29: #{bengio_forward.1} parent=23 // pred_check
        %p188 = pneg %p74
      $region30: #{bengio_forward.1} parent=23 // pred_check_branch
        %190 = sbr.rel (%p188) target = $region32
      $region31: #{bengio_forward.1} parent=23 // pred_region
        %s191 = sadd.s32 %s18, 1
        %s192 = smul.u32 2, %s191
        %p193 = scmp.lt.s32.totalorder %s17, 1
        %s194 = scalar_select %p193, %s17, 1
        %p195 = scmp.lt.s32.totalorder %s192, 3
        %s196 = scalar_select %p195, %s192, 3
        %s197 = smul.addr %s194, 4
        %s198 = sadd.s32 %s196, %s197
        %s199 = smul.addr %s198, 4
        %s200 = scalar_lea.vmem %s1, %s199
        %s201 = sadd.s32 %s18, 1
        %s202 = smul.u32 2, %s201
      $region32: #{bengio_forward.1} parent=23 // pred_fallthru
        _
    $region24: #{bengio_forward.1} parent=5 // pred_fallthru
      _
    %p203 = scmp.le.s32.totalorder 1, %s10
    %p204 = scmp.lt.s32.totalorder %s10, 3
    %p205 = pnand %p203, %p204
    %p206 = pneg %p205
    // Predicated region
    $region33: #{bengio_forward.1} parent=5 // pred_check
      _
    $region34: #{bengio_forward.1} parent=5 // pred_check_branch
      %208 = sbr.rel (%p205) target = $region36
    $region35: #{bengio_forward.1} parent=5 // pred_region
      %s209 = ssub.s32 %s10, 1
      %s210 = smul.u32 2, %s20
      %p211 = scmp.lt.s32.totalorder %s19, 1
      %s212 = scalar_select %p211, %s19, 1
      %p213 = scmp.lt.s32.totalorder %s210, 3
      %s214 = scalar_select %p213, %s210, 3
      %s215 = smul.addr %s212, 4
      %s216 = sadd.s32 %s214, %s215
      %s217 = smul.addr %s216, 4
      %s218 = scalar_lea.vmem %s0, %s217
      %p219 = pneg %p50
      %p220 = pneg %p47
      %s221 = sadd.s32 %s20, 1
      %s222 = smul.u32 2, %s221
      %p223 = scmp.lt.s32.totalorder %s19, 1
      %s224 = scalar_select %p223, %s19, 1
      %p225 = scmp.lt.s32.totalorder %s222, 3
      %s226 = scalar_select %p225, %s222, 3
      %s227 = smul.addr %s224, 4
      %s228 = sadd.s32 %s226, %s227
      %s229 = smul.addr %s228, 4
      %s230 = scalar_lea.vmem %s1, %s229
      %p231 = pneg %p80
      %p232 = pneg %p77
      %p233 = pneg %p101
      %p234 = pneg %p98
      %p235 = pneg %p122
      %p236 = pneg %p119
      %p237 = pneg %p150
      %p238 = pneg %p147
      %s239 = smul.u32 2, %s20
      %p240 = scmp.lt.s32.totalorder %s19, 1
      %s241 = scalar_select %p240, %s19, 1
      %p242 = scmp.lt.s32.totalorder %s239, 1
      %s243 = scalar_select %p242, %s239, 1
      %s244 = smul.addr %s241, 2
      %s245 = sadd.s32 %s243, %s244
      %s246 = smul.addr %s245, 8
      %s247 = scalar_lea.vmem %s4, %s246
      %s248 = smul.u32 2, %s20
      %p249 = scmp.lt.s32.totalorder %s19, 1
      %s250 = scalar_select %p249, %s19, 1
      %p251 = scmp.lt.s32.totalorder %s248, 3
      %s252 = scalar_select %p251, %s248, 3
      %s253 = smul.addr %s250, 4
      %s254 = sadd.s32 %s252, %s253
      %s255 = smul.addr %s254, 4
      %s256 = scalar_lea.vmem %s0, %s255
      %s257 = smul.u32 2, %s20
      %s258 = sadd.s32 %s20, 1
      %s259 = smul.u32 2, %s258
      %p260 = scmp.lt.s32.totalorder %s19, 1
      %s261 = scalar_select %p260, %s19, 1
      %p262 = scmp.lt.s32.totalorder %s259, 3
      %s263 = scalar_select %p262, %s259, 3
      %s264 = smul.addr %s261, 4
      %s265 = sadd.s32 %s263, %s264
      %s266 = smul.addr %s265, 4
      %s267 = scalar_lea.vmem %s1, %s266
      %s268 = sadd.s32 %s20, 1
      %s269 = smul.u32 2, %s268
      %s270 = smul.u32 2, %s20
      %p271 = scmp.lt.s32.totalorder %s19, 1
      %s272 = scalar_select %p271, %s19, 1
      %p273 = scmp.lt.s32.totalorder %s270, 1
      %s274 = scalar_select %p273, %s270, 1
      %s275 = smul.addr %s272, 2
      %s276 = sadd.s32 %s274, %s275
      %s277 = smul.addr %s276, 8
      %s278 = scalar_lea.vmem %s4, %s277
      %s279 = smul.u32 2, %s20
      %v281 = vld [vmem:[%s256] sm:$0xf]
      %v282 = vld [vmem:[%s256 + $0x4] sm:$0xf]
      %v283 = vld [vmem:[%s267] sm:$0xf]
      %v284 = vld [vmem:[%s267 + $0x4] sm:$0xf]
      %v287 = vunpack.c.l.b16 %v281
      %v288 = vunpack.c.l.b16 %v282
      %v289 = vpack.c.b16 %v288, %v287
      %v292 = vunpack.c.l.b16 %v283
      %v293 = vunpack.c.l.b16 %v284
      %v294 = vpack.c.b16 %v293, %v292
      %v295 = vld [vmem:[%s2] sm:$0xf]
      %v296 = vld [vmem:[%s2 + $0x4] sm:$0xf]
      %v297 = vld [vmem:[%s2 + $0x8] sm:$0xf]
      %v298 = vld [vmem:[%s2 + $0xc] sm:$0xf]
      %v303 = vunpack.c.l.b16 %v295
      %v304 = vunpack.c.l.b16 %v296
      %v305 = vunpack.c.l.b16 %v297
      %v306 = vunpack.c.l.b16 %v298
      %v307 = vpack.c.b16 %v304, %v303
      %v308 = vpack.c.b16 %v306, %v305
      %vm311 = vcmask 261120
      %v313 = vsel %vm311, %v289, 0
      %v316 = vsel %vm311, %v294, 0
      %318 = vmatprep.subr.bf16.mxu0 0
      %319 = vmatpush1.bf16.msra.mxu0 %v307
      %320 = vmatprep.subr.bf16.mxu0 0
      %321 = vmatpush1.bf16.msra.mxu0 %v308
      %322 = vmatprep.subr.bf16.mxu0 0
      %323 = vmatpush1.bf16.msra.mxu0 0
      %324 = vmatprep.subr.bf16.mxu0 0
      %325 = vmatpush1.bf16.msra.mxu0 0
      %326 = vmatprep.subr.bf16.mxu0 0
      %327 = vmatpush1.bf16.msra.mxu0 0
      %328 = vmatprep.subr.bf16.mxu0 0
      %329 = vmatpush1.bf16.msra.mxu0 0
      %330 = vmatprep.subr.bf16.mxu0 0
      %331 = vmatpush1.bf16.msra.mxu0 0
      %332 = vmatprep.subr.bf16.mxu0 0
      %333 = vmatpush1.bf16.msra.mxu0 0
      %334 = vmatprep.subr.bf16.mxu0 0
      %335 = vmatpush1.bf16.msra.mxu0 0
      %336 = vmatprep.subr.bf16.mxu0 0
      %337 = vmatpush1.bf16.msra.mxu0 0
      %338 = vmatprep.subr.bf16.mxu0 0
      %339 = vmatpush1.bf16.msra.mxu0 0
      %340 = vmatprep.subr.bf16.mxu0 0
      %341 = vmatpush1.bf16.msra.mxu0 0
      %342 = vmatprep.subr.bf16.mxu0 0
      %343 = vmatpush1.bf16.msra.mxu0 0
      %344 = vmatprep.subr.bf16.mxu0 0
      %345 = vmatpush1.bf16.msra.mxu0 0
      %346 = vmatprep.subr.bf16.mxu0 0
      %347 = vmatpush1.bf16.msra.mxu0 0
      %348 = vmatprep.subr.bf16.mxu0 0
      %349 = vmatpush1.bf16.msra.mxu0 0
      %350 = vmatprep.mubr.bf16.mxu0 0
      %351 = vmatmul.mubr.bf16.gmra.mrb[0].mxu0 %v313
      %v352 = vpop.f32.mrb[0].mxu0
      %v353 = vadd.f32 0.0, %v352
      %v354 = vpop.f32.mrb[0].mxu0
      %v355 = vpop.f32.mrb[0].mxu0
      %v356 = vadd.f32 0.0, %v355
      %v357 = vpop.f32.mrb[0].mxu0
      %358 = vmatprep.mubr.bf16.mxu0 0
      %359 = vmatmul.mubr.bf16.gmra.mrb[0].mxu0 %v316
      %v360 = vpop.f32.mrb[0].mxu0
      %v361 = vpop.f32.mrb[0].mxu0
      %v362 = vpop.f32.mrb[0].mxu0
      %v363 = vpop.f32.mrb[0].mxu0
      %364 = vdwg.mxu0
      %s365 = scalar_lea.vmem %s2, 16
      %v366 = vld [vmem:[%s365] sm:$0xf]
      %v367 = vld [vmem:[%s365 + $0x4] sm:$0xf]
      %v368 = vld [vmem:[%s365 + $0x8] sm:$0xf]
      %v369 = vld [vmem:[%s365 + $0xc] sm:$0xf]
      %v374 = vunpack.c.l.b16 %v366
      %v375 = vunpack.c.l.b16 %v367
      %v376 = vunpack.c.l.b16 %v368
      %v377 = vunpack.c.l.b16 %v369
      %v378 = vpack.c.b16 %v375, %v374
      %v379 = vpack.c.b16 %v377, %v376
      %382 = vmatprep.subr.bf16.mxu0 0
      %383 = vmatpush1.bf16.msra.mxu0 %v378
      %384 = vmatprep.subr.bf16.mxu0 0
      %385 = vmatpush1.bf16.msra.mxu0 %v379
      %386 = vmatprep.subr.bf16.mxu0 0
      %387 = vmatpush1.bf16.msra.mxu0 0
      %388 = vmatprep.subr.bf16.mxu0 0
      %389 = vmatpush1.bf16.msra.mxu0 0
      %390 = vmatprep.subr.bf16.mxu0 0
      %391 = vmatpush1.bf16.msra.mxu0 0
      %392 = vmatprep.subr.bf16.mxu0 0
      %393 = vmatpush1.bf16.msra.mxu0 0
      %394 = vmatprep.subr.bf16.mxu0 0
      %395 = vmatpush1.bf16.msra.mxu0 0
      %396 = vmatprep.subr.bf16.mxu0 0
      %397 = vmatpush1.bf16.msra.mxu0 0
      %398 = vmatprep.subr.bf16.mxu0 0
      %399 = vmatpush1.bf16.msra.mxu0 0
      %400 = vmatprep.subr.bf16.mxu0 0
      %401 = vmatpush1.bf16.msra.mxu0 0
      %402 = vmatprep.subr.bf16.mxu0 0
      %403 = vmatpush1.bf16.msra.mxu0 0
      %404 = vmatprep.subr.bf16.mxu0 0
      %405 = vmatpush1.bf16.msra.mxu0 0
      %406 = vmatprep.subr.bf16.mxu0 0
      %407 = vmatpush1.bf16.msra.mxu0 0
      %408 = vmatprep.subr.bf16.mxu0 0
      %409 = vmatpush1.bf16.msra.mxu0 0
      %410 = vmatprep.subr.bf16.mxu0 0
      %411 = vmatpush1.bf16.msra.mxu0 0
      %412 = vmatprep.subr.bf16.mxu0 0
      %413 = vmatpush1.bf16.msra.mxu0 0
      %414 = vmatprep.mubr.bf16.mxu0 0
      %415 = vmatmul.mubr.bf16.gmra.mrb[0].mxu0 %v313
      %v416 = vpop.f32.mrb[0].mxu0
      %v417 = vadd.f32 0.0, %v416
      %v418 = vpop.f32.mrb[0].mxu0
      %v419 = vpop.f32.mrb[0].mxu0
      %v420 = vadd.f32 0.0, %v419
      %v421 = vpop.f32.mrb[0].mxu0
      %422 = vmatprep.mubr.bf16.mxu0 0
      %423 = vmatmul.mubr.bf16.gmra.mrb[0].mxu0 %v316
      %v424 = vpop.f32.mrb[0].mxu0
      %v425 = vadd.f32 0.0, %v424
      %v426 = vpop.f32.mrb[0].mxu0
      %v427 = vpop.f32.mrb[0].mxu0
      %v428 = vpop.f32.mrb[0].mxu0
      %429 = vdwg.mxu0
      %vm433 = vcmask 1046528
      %v434 = vrot.slane %v417, 1
      %v435 = vrot.slane %v420, 1
      %v436 = vsel %vm433, %v434, %v435
      %v437 = vrot.slane %v425, 1
      %v438 = vsel %vm433, %v435, %v437
      %v441 = vadd.f32 %v353, %v436
      %v442 = vadd.f32 %v356, %v438
      %s443 = scalar_lea.vmem %s2, 32
      %v444 = vld [vmem:[%s443] sm:$0xf]
      %v445 = vld [vmem:[%s443 + $0x4] sm:$0xf]
      %v446 = vld [vmem:[%s443 + $0x8] sm:$0xf]
      %v447 = vld [vmem:[%s443 + $0xc] sm:$0xf]
      %v452 = vunpack.c.l.b16 %v444
      %v453 = vunpack.c.l.b16 %v445
      %v454 = vunpack.c.l.b16 %v446
      %v455 = vunpack.c.l.b16 %v447
      %v456 = vpack.c.b16 %v453, %v452
      %v457 = vpack.c.b16 %v455, %v454
      %460 = vmatprep.subr.bf16.mxu0 0
      %461 = vmatpush1.bf16.msra.mxu0 %v456
      %462 = vmatprep.subr.bf16.mxu0 0
      %463 = vmatpush1.bf16.msra.mxu0 %v457
      %464 = vmatprep.subr.bf16.mxu0 0
      %465 = vmatpush1.bf16.msra.mxu0 0
      %466 = vmatprep.subr.bf16.mxu0 0
      %467 = vmatpush1.bf16.msra.mxu0 0
      %468 = vmatprep.subr.bf16.mxu0 0
      %469 = vmatpush1.bf16.msra.mxu0 0
      %470 = vmatprep.subr.bf16.mxu0 0
      %471 = vmatpush1.bf16.msra.mxu0 0
      %472 = vmatprep.subr.bf16.mxu0 0
      %473 = vmatpush1.bf16.msra.mxu0 0
      %474 = vmatprep.subr.bf16.mxu0 0
      %475 = vmatpush1.bf16.msra.mxu0 0
      %476 = vmatprep.subr.bf16.mxu0 0
      %477 = vmatpush1.bf16.msra.mxu0 0
      %478 = vmatprep.subr.bf16.mxu0 0
      %479 = vmatpush1.bf16.msra.mxu0 0
      %480 = vmatprep.subr.bf16.mxu0 0
      %481 = vmatpush1.bf16.msra.mxu0 0
      %482 = vmatprep.subr.bf16.mxu0 0
      %483 = vmatpush1.bf16.msra.mxu0 0
      %484 = vmatprep.subr.bf16.mxu0 0
      %485 = vmatpush1.bf16.msra.mxu0 0
      %486 = vmatprep.subr.bf16.mxu0 0
      %487 = vmatpush1.bf16.msra.mxu0 0
      %488 = vmatprep.subr.bf16.mxu0 0
      %489 = vmatpush1.bf16.msra.mxu0 0
      %490 = vmatprep.subr.bf16.mxu0 0
      %491 = vmatpush1.bf16.msra.mxu0 0
      %492 = vmatprep.mubr.bf16.mxu0 0
      %493 = vmatmul.mubr.bf16.gmra.mrb[0].mxu0 %v313
      %v494 = vpop.f32.mrb[0].mxu0
      %v495 = vadd.f32 0.0, %v494
      %v496 = vpop.f32.mrb[0].mxu0
      %v497 = vpop.f32.mrb[0].mxu0
      %v498 = vadd.f32 0.0, %v497
      %v499 = vpop.f32.mrb[0].mxu0
      %500 = vmatprep.mubr.bf16.mxu0 0
      %501 = vmatmul.mubr.bf16.gmra.mrb[0].mxu0 %v316
      %v502 = vpop.f32.mrb[0].mxu0
      %v503 = vadd.f32 0.0, %v502
      %v504 = vpop.f32.mrb[0].mxu0
      %v505 = vpop.f32.mrb[0].mxu0
      %v506 = vpop.f32.mrb[0].mxu0
      %507 = vdwg.mxu0
      %vm511 = vcmask 1045504
      %v512 = vrot.slane %v495, 2
      %v513 = vrot.slane %v498, 2
      %v514 = vsel %vm511, %v512, %v513
      %v515 = vrot.slane %v503, 2
      %v516 = vsel %vm511, %v513, %v515
      %v519 = vadd.f32 %v441, %v514
      %v520 = vadd.f32 %v442, %v516
      %v521 = vld [vmem:[%s3] sm:$0x1]
      %v523 = vlaneseq
      %v524 = vshrl.u32 %v523, 7
      %v525 = vsub.s32 0, %v524
      %v526 = vrot.slane %v521, %v525
      %v528 = vadd.f32 %v519, %v526
      %v529 = vadd.f32 %v520, %v526
      %v530 = vtanh.pop %v528
      %v531 = vtanh.pop %v529
      %532 = vst [vmem:[%s278] sm:$0xff] %v530
      %533 = vst [vmem:[%s278 + $0x8] sm:$0xff] %v531
      %s534 = smul.u32 2, %s20
      %p535 = scmp.lt.s32.totalorder %s19, 1
      %s536 = scalar_select %p535, %s19, 1
      %p537 = scmp.lt.s32.totalorder %s534, 1
      %s538 = scalar_select %p537, %s534, 1
      %s539 = smul.addr %s536, 2
      %s540 = sadd.s32 %s538, %s539
      %s541 = smul.addr %s540, 8
      %s542 = scalar_lea.vmem %s4, %s541
      // Predicated region
      $region37: #{bengio_forward.1} parent=35 // pred_check
        %p543 = pneg %p147
      $region38: #{bengio_forward.1} parent=35 // pred_check_branch
        %545 = sbr.rel (%p543) target = $region40
      $region39: #{bengio_forward.1} parent=35 // pred_region
        %s546 = smul.u32 2, %s20
      $region40: #{bengio_forward.1} parent=35 // pred_fallthru
        _
    $region36: #{bengio_forward.1} parent=5 // pred_fallthru
      _
    %p547 = scmp.le.s32.totalorder 2, %s10
    // Predicated region
    $region41: #{bengio_forward.1} parent=5 // pred_check
      %p548 = pneg %p547
    $region42: #{bengio_forward.1} parent=5 // pred_check_branch
      %550 = sbr.rel (%p548) target = $region44
    $region43: #{bengio_forward.1} parent=5 // pred_region
      %s551 = ssub.s32 %s10, 2
      // Predicated region
      $region45: #{bengio_forward.1} parent=43 // pred_check
        %p552 = pneg %p153
      $region46: #{bengio_forward.1} parent=43 // pred_check_branch
        %554 = sbr.rel (%p552) target = $region48
      $region47: #{bengio_forward.1} parent=43 // pred_region
        %s555 = smul.u32 2, %s22
        %p556 = scmp.lt.s32.totalorder %s21, 1
        %s557 = scalar_select %p556, %s21, 1
        %p558 = scmp.lt.s32.totalorder %s555, 1
        %s559 = scalar_select %p558, %s555, 1
        %s560 = smul.addr %s557, 2
        %s561 = sadd.s32 %s559, %s560
        %s562 = smul.addr %s561, 8
        %s563 = scalar_lea.vmem %s4, %s562
      $region48: #{bengio_forward.1} parent=43 // pred_fallthru
        _
    $region44: #{bengio_forward.1} parent=5 // pred_fallthru
      _
  $region6: #{bengio_forward.1} parent=0 // loop_footer
    %s14 = sadd.s32 1, %s10
  $region7: #{bengio_forward.1} parent=0 // loop_footer_branch
    %9 = sbr.rel target = $region3
  $region8: #{bengio_forward.1} parent=0 // loop_exit
    _

</llo_original>
